<compile_context>
chip_gen: v7x
topology: tpu7x:2x2x1
jax: 0.10.0
libtpu: 0.0.40
codegen_flags: <defaults>
</compile_context>

<pallas_src>
import jax
import jax.numpy as jnp
from jax import lax
from jax.experimental import pallas as pl
from jax.experimental.pallas import tpu as pltpu


IN_PLANES = 256          # stand-in for 2048 (resnet50 in_planes) at small test scale
NUM_CLASSES = 16
NUM_CLASSES_PAD = 128    # lane-dense classifier output (sliced back in wrapper)
BN_EPS = 1e-5

_SUBLANE = 16            # T-tile granularity (safe for f32 and bf16 blocks)


def _round_up(x, m):
    return -(-x // m) * m


def _vmem_budgets():
    """(scoped vmem_limit_bytes, per-x-tile byte budget), generation aware."""
    try:
        vmem_bytes = int(pltpu.get_tpu_info().vmem_capacity_bytes)
    except Exception:
        vmem_bytes = 64 << 20                      # conservative fallback (v7x)
    if vmem_bytes >= (100 << 20):                  # v5e / v6e: 128 MiB VMEM
        return 64 << 20, 12 << 20
    return 40 << 20, 8 << 20                       # v7x: 64 MiB VMEM per TC


def _choose_tiles(b, T, C, itemsize, x_tile_budget):
    """Pick (tb, tT): >=2 batch tiles when b>=2 (megacore), largest tT that fits."""
    if b >= 16:
        tb = 8
    elif b >= 2:
        tb = (b + 1) // 2                          # exactly 2 batch tiles
    else:
        tb = 1
    max_tT = max(_SUBLANE, x_tile_budget // max(1, tb * C * itemsize))
    max_tT = (max_tT // _SUBLANE) * _SUBLANE
    tT = min(max_tT, _round_up(T, _SUBLANE))
    return tb, tT


def nchw_to_channels_last(feat_map_nchw):
    """Layout fallback for PyTorch-style (b, t, C, H, W) inputs (not hot path)."""
    return jnp.transpose(feat_map_nchw, (0, 1, 3, 4, 2))


# ---------------------------------------------------------------------------
# kernels
# ---------------------------------------------------------------------------
def _make_kernel(T, tT, inv_T, training):
    needs_t_mask = (T % tT) != 0

    def _accumulate(x_ref, acc_ref):
        t_step = pl.program_id(1)

        @pl.when(t_step == 0)
        def _init():
            acc_ref[...] = jnp.zeros_like(acc_ref)

        # steady state: pure streaming partial sum (hidden under DMA), f32 accumulate.
        x = x_ref[...].astype(jnp.float32)                      # (tb, tT, C)
        if needs_t_mask:
            # partial last T block: OOB rows are undefined -> mask before accumulating.
            remaining = T - t_step * tT
            row_idx = lax.broadcasted_iota(jnp.int32, (1, tT, 1), 1)
            x = jnp.where(row_idx < remaining, x, 0.0)
        acc_ref[...] += jnp.sum(x, axis=1)

    if training:
        def kernel(x_ref, scale_ref, bias_ref, w_ref, feat_ref, cls_ref, acc_ref):
            _accumulate(x_ref, acc_ref)

            @pl.when(pl.program_id(1) == pl.num_programs(1) - 1)
            def _finalize():
                feature = acc_ref[...] * inv_T                          # AdaptiveAvgPool3d
                feat_ref[...] = feature[None]
                bn = feature * scale_ref[...] + bias_ref[...]           # BatchNorm1d (eval)
                cls_ref[...] = jnp.dot(bn, w_ref[...],                  # Linear, bias=False
                                       preferred_element_type=jnp.float32)[None]
        return kernel

    def kernel(x_ref, scale_ref, bias_ref, bn_ref, acc_ref):
        _accumulate(x_ref, acc_ref)

        @pl.when(pl.program_id(1) == pl.num_programs(1) - 1)
        def _finalize():
            feature = acc_ref[...] * inv_T                              # AdaptiveAvgPool3d
            bn_ref[...] = (feature * scale_ref[...] + bias_ref[...])[None]
    return kernel


# ---------------------------------------------------------------------------
# wrapper
# ---------------------------------------------------------------------------
def app_refine_forward(feat_map, params, pids=None, camids=None, training=False,
                       _force_tT=None):
    """app_refine.forward() head on the backbone output.

    feat_map: (b, t, H, W, C) channels-last backbone features, f32 or bf16
              (bf16 is the intended production streaming dtype).
    """
    b, t, H, W, C = feat_map.shape
    assert C == IN_PLANES
    T = t * H * W
    inv_T = 1.0 / float(T)

    # channels-last -> (b, T, C) is a pure reshape (no HBM transpose round trip).
    x = feat_map.reshape(b, T, C)

    vmem_limit, x_tile_budget = _vmem_budgets()
    itemsize = jnp.dtype(x.dtype).itemsize
    tb, tT = _choose_tiles(b, T, C, itemsize, x_tile_budget)
    if _force_tT is not None:                      # test hook (multi-step + mask paths)
        tT = _force_tT
    n_bt = -(-b // tb)
    n_tt = -(-T // tT)

    # Fold BN running stats into a single scale/shift (eval semantics).
    gamma = params["bn_gamma"].astype(jnp.float32)
    inv_std = 1.0 / jnp.sqrt(params["bn_var"].astype(jnp.float32) + BN_EPS)
    scale = (gamma * inv_std).reshape(1, C)
    bias = (params["bn_beta"].astype(jnp.float32)
            - params["bn_mean"].astype(jnp.float32) * gamma * inv_std).reshape(1, C)

    grid = (n_bt, n_tt)
    x_spec = pl.BlockSpec((tb, tT, C), lambda bi, ti: (bi, ti, 0))
    vec_spec = pl.BlockSpec((1, C), lambda bi, ti: (0, 0))
    # 3-D (n_bt, tb, C) outputs keep the (sublane, lane) block dims equal to the
    # full array dims for any tb; garbage batch-edge rows are sliced off below.
    out3_spec = pl.BlockSpec((1, tb, C), lambda bi, ti: (bi, 0, 0))
    compiler_params = pltpu.CompilerParams(
        dimension_semantics=("parallel", "arbitrary"),   # batch tiles shard across TCs
        vmem_limit_bytes=vmem_limit,
    )
    scratch = [pltpu.VMEM((tb, C), jnp.float32)]
    kernel = _make_kernel(T, tT, inv_T, training)

    if training:
        # classifier weight, transposed and lane-padded to 128 (unmasked stores).
        w_t = jnp.zeros((C, NUM_CLASSES_PAD), jnp.float32)
        w_t = w_t.at[:, :NUM_CLASSES].set(params["cls_w"].T.astype(jnp.float32))
        w_spec = pl.BlockSpec((C, NUM_CLASSES_PAD), lambda bi, ti: (0, 0))
        cls_spec = pl.BlockSpec((1, tb, NUM_CLASSES_PAD), lambda bi, ti: (bi, 0, 0))

        feat3, cls3 = pl.pallas_call(
            kernel,
            grid=grid,
            in_specs=[x_spec, vec_spec, vec_spec, w_spec],
            out_specs=(out3_spec, cls_spec),
            out_shape=(
                jax.ShapeDtypeStruct((n_bt, tb, C), jnp.float32),
                jax.ShapeDtypeStruct((n_bt, tb, NUM_CLASSES_PAD), jnp.float32),
            ),
            scratch_shapes=scratch,
            compiler_params=compiler_params,
        )(x, scale, bias, w_t)
        feature = feat3.reshape(n_bt * tb, C)[:b]
        cls_score = cls3.reshape(n_bt * tb, NUM_CLASSES_PAD)[:b, :NUM_CLASSES]
        return cls_score, feature

    # eval path only needs BN_feature: skip feature/cls outputs entirely.
    bn3 = pl.pallas_call(
        kernel,
        grid=grid,
        in_specs=[x_spec, vec_spec, vec_spec],
        out_specs=out3_spec,
        out_shape=jax.ShapeDtypeStruct((n_bt, tb, C), jnp.float32),
        scratch_shapes=scratch,
        compiler_params=compiler_params,
    )(x, scale, bias)
    return bn3.reshape(n_bt * tb, C)[:b], pids, camids


# ---------------------------------------------------------------------------
# params + reference
# ---------------------------------------------------------------------------
def make_params(key):
    """Deterministic parameter init mirroring app_refine.__init__."""
    bn_gamma = jnp.ones((IN_PLANES,), jnp.float32)     # weights_init_kaiming on BN
    bn_beta = jnp.zeros((IN_PLANES,), jnp.float32)
    bn_mean = jnp.zeros((IN_PLANES,), jnp.float32)
    bn_var = jnp.ones((IN_PLANES,), jnp.float32)
    cls_w = 0.001 * jax.random.normal(key, (NUM_CLASSES, IN_PLANES), jnp.float32)
    return dict(bn_gamma=bn_gamma, bn_beta=bn_beta, bn_mean=bn_mean,
                bn_var=bn_var, cls_w=cls_w)


def _reference(feat_map, params):
    """Pure-JAX reference mirroring the PyTorch forward (channels-last input)."""
    feature = jnp.mean(feat_map.astype(jnp.float32), axis=(1, 2, 3))   # (b, C)
    inv_std = 1.0 / jnp.sqrt(params["bn_var"] + BN_EPS)
    bn = (feature - params["bn_mean"]) * inv_std * params["bn_gamma"] + params["bn_beta"]
    cls = bn @ params["cls_w"].T
    return feature, bn, cls


if __name__ == "__main__":
    key = jax.random.PRNGKey(0)
    k_x, k_w, k_x2 = jax.random.split(key, 3)
    params = make_params(k_w)

    # --- case 1: aligned shapes, f32 ------------------------------------------------
    b, t, H, W = 2, 4, 4, 4
    feat_map = jax.random.normal(k_x, (b, t, H, W, IN_PLANES), jnp.float32)
    pids = jnp.arange(b, dtype=jnp.int32)
    camids = jnp.zeros((b,), jnp.int32)

    # eval path (module's self.training == False): returns (BN_feature, pids, camids)
    bn_feature, out_pids, out_camids = app_refine_forward(
        feat_map, params, pids=pids, camids=camids, training=False)
    # training path (inference-BN approximation, see TODO above)
    cls_score, feature = app_refine_forward(feat_map, params, training=True)
    jax.block_until_ready((bn_feature, cls_score, feature))

    ref_feat, ref_bn, ref_cls = _reference(feat_map, params)
    assert jnp.allclose(feature, ref_feat, atol=1e-5, rtol=1e-5)
    assert jnp.allclose(bn_feature, ref_bn, atol=1e-5, rtol=1e-5)
    assert jnp.allclose(cls_score, ref_cls, atol=1e-5, rtol=1e-5)

    # --- case 2: bf16 streaming (production default; f32 accumulation in-kernel) ----
    bn_bf16, _, _ = app_refine_forward(
        feat_map.astype(jnp.bfloat16), params, pids=pids, camids=camids, training=False)
    jax.block_until_ready(bn_bf16)
    assert jnp.allclose(bn_bf16, ref_bn, atol=3e-2, rtol=3e-2)

    # --- case 3: ragged shapes -> in-kernel T mask + batch-edge drop (no jnp.pad) ---
    b2, t2, H2, W2 = 3, 4, 3, 3                      # T = 36 (not a multiple of 16)
    fm2 = jax.random.normal(k_x2, (b2, t2, H2, W2, IN_PLANES), jnp.float32)
    bn2, _, _ = app_refine_forward(fm2, params, training=False, _force_tT=16)
    cls2, feat2 = app_refine_forward(fm2, params, training=True, _force_tT=16)
    jax.block_until_ready((bn2, cls2, feat2))
    r_feat2, r_bn2, r_cls2 = _reference(fm2, params)
    assert jnp.allclose(feat2, r_feat2, atol=1e-5, rtol=1e-5)
    assert jnp.allclose(bn2, r_bn2, atol=1e-5, rtol=1e-5)
    assert jnp.allclose(cls2, r_cls2, atol=1e-5, rtol=1e-5)

    print("KERNEL_OK")
</pallas_src>

<mosaic_0001>
module attributes {stable_mosaic.version = 11 : i64} {
  func.func @kernel(%arg0: i32, %arg1: i32, %arg2: memref<1x64x256xf32, #tpu.memory_space<vmem>>, %arg3: memref<1x256xf32, #tpu.memory_space<vmem>>, %arg4: memref<1x256xf32, #tpu.memory_space<vmem>>, %arg5: memref<1x1x256xf32, #tpu.memory_space<vmem>>, %arg6: memref<1x256xf32, #tpu.memory_space<vmem>>) attributes {dimension_semantics = [#tpu.dimension_semantics<parallel>, #tpu.dimension_semantics<arbitrary>], iteration_bounds = array<i64: 2, 1>, scalar_prefetch = 0 : i64, scratch_operands = 1 : i64, tpu.core_type = #tpu.core_type<tc>, window_params = [{transform_indices = @transform_0, window_bounds = array<i64: 1, 64, 256>}, {pipeline_mode = #tpu.pipeline_mode<synchronous>, transform_indices = @transform_1, window_bounds = array<i64: 1, 256>}, {pipeline_mode = #tpu.pipeline_mode<synchronous>, transform_indices = @transform_2, window_bounds = array<i64: 1, 256>}, {transform_indices = @transform_3, window_bounds = array<i64: 1, 1, 256>}]} {
    %c0_i32 = arith.constant 0 : i32
    %0 = arith.cmpi eq, %arg1, %c0_i32 : i32
    %1 = arith.extui %0 : i1 to i32
    %c0_i32_0 = arith.constant 0 : i32
    %2 = arith.cmpi ne, %1, %c0_i32_0 : i32
    scf.if %2 {
      %cst_9 = arith.constant 0.000000e+00 : f32
      %11 = vector.broadcast %cst_9 : f32 to vector<1x256xf32>
      %c0_10 = arith.constant 0 : index
      %c0_11 = arith.constant 0 : index
      %12 = vector.load %arg6[%c0_10, %c0_11] : memref<1x256xf32, #tpu.memory_space<vmem>>, vector<1x256xf32>
      tpu.vector_store %arg6[%c0_10, %c0_11], %11 {strides = array<i32>} : memref<1x256xf32, #tpu.memory_space<vmem>>, vector<1x256xf32>,
    } else {
    }
    %c0 = arith.constant 0 : index
    %c0_1 = arith.constant 0 : index
    %c0_2 = arith.constant 0 : index
    %3 = vector.load %arg2[%c0, %c0_1, %c0_2] : memref<1x64x256xf32, #tpu.memory_space<vmem>>, vector<1x64x256xf32>
    %c0_3 = arith.constant 0 : index
    %c0_4 = arith.constant 0 : index
    %4 = vector.load %arg6[%c0_3, %c0_4] : memref<1x256xf32, #tpu.memory_space<vmem>>, vector<1x256xf32>
    %cst = arith.constant dense<0.000000e+00> : vector<1x256xf32>
    %5 = vector.multi_reduction <add>, %3, %cst [1] : vector<1x64x256xf32> to vector<1x256xf32>
    %6 = arith.addf %4, %5 : vector<1x256xf32>
    %c0_5 = arith.constant 0 : index
    %c0_6 = arith.constant 0 : index
    %7 = vector.load %arg6[%c0_5, %c0_6] : memref<1x256xf32, #tpu.memory_space<vmem>>, vector<1x256xf32>
    tpu.vector_store %arg6[%c0_5, %c0_6], %6 {strides = array<i32>} : memref<1x256xf32, #tpu.memory_space<vmem>>, vector<1x256xf32>,
    %c0_i32_7 = arith.constant 0 : i32
    %8 = arith.cmpi eq, %arg1, %c0_i32_7 : i32
    %9 = arith.extui %8 : i1 to i32
    %c0_i32_8 = arith.constant 0 : i32
    %10 = arith.cmpi ne, %9, %c0_i32_8 : i32
    scf.if %10 {
      %c0_9 = arith.constant 0 : index
      %c0_10 = arith.constant 0 : index
      %11 = vector.load %arg6[%c0_9, %c0_10] : memref<1x256xf32, #tpu.memory_space<vmem>>, vector<1x256xf32>
      %cst_11 = arith.constant 1.562500e-02 : f32
      %12 = vector.broadcast %cst_11 : f32 to vector<1x256xf32>
      %13 = arith.mulf %11, %12 : vector<1x256xf32>
      %c0_12 = arith.constant 0 : index
      %c0_13 = arith.constant 0 : index
      %14 = vector.load %arg3[%c0_12, %c0_13] : memref<1x256xf32, #tpu.memory_space<vmem>>, vector<1x256xf32>
      %15 = arith.mulf %13, %14 : vector<1x256xf32>
      %c0_14 = arith.constant 0 : index
      %c0_15 = arith.constant 0 : index
      %16 = vector.load %arg4[%c0_14, %c0_15] : memref<1x256xf32, #tpu.memory_space<vmem>>, vector<1x256xf32>
      %17 = arith.addf %15, %16 : vector<1x256xf32>
      %18 = vector.shape_cast %17 : vector<1x256xf32> to vector<1x1x256xf32>
      %c0_16 = arith.constant 0 : index
      %c0_17 = arith.constant 0 : index
      %c0_18 = arith.constant 0 : index
      %19 = vector.load %arg5[%c0_16, %c0_17, %c0_18] : memref<1x1x256xf32, #tpu.memory_space<vmem>>, vector<1x1x256xf32>
      tpu.vector_store %arg5[%c0_16, %c0_17, %c0_18], %18 {strides = array<i32>} : memref<1x1x256xf32, #tpu.memory_space<vmem>>, vector<1x1x256xf32>,
    } else {
    }
    return
  }
  func.func @transform_0(%arg0: i32, %arg1: i32) -> (i32, i32, i32) {
    %c0_i32 = arith.constant 0 : i32
    %c0_i32_0 = arith.constant 0 : i32
    return %arg0, %arg1, %c0_i32 : i32, i32, i32
  }
  func.func @transform_1(%arg0: i32, %arg1: i32) -> (i32, i32) {
    %c0_i32 = arith.constant 0 : i32
    %c0_i32_0 = arith.constant 0 : i32
    %c0_i32_1 = arith.constant 0 : i32
    return %c0_i32, %c0_i32_0 : i32, i32
  }
  func.func @transform_2(%arg0: i32, %arg1: i32) -> (i32, i32) {
    %c0_i32 = arith.constant 0 : i32
    %c0_i32_0 = arith.constant 0 : i32
    %c0_i32_1 = arith.constant 0 : i32
    return %c0_i32, %c0_i32_0 : i32, i32
  }
  func.func @transform_3(%arg0: i32, %arg1: i32) -> (i32, i32, i32) {
    %c0_i32 = arith.constant 0 : i32
    %c0_i32_0 = arith.constant 0 : i32
    %c0_i32_1 = arith.constant 0 : i32
    return %arg0, %c0_i32, %c0_i32_0 : i32, i32, i32
  }
}

</mosaic_0001>

<llo_original>
// kernel: tpu_custom_call.1
$region0: #{tpu_custom_call.1}
  #allocation0 [shape = 'u32[]', space=smem, size = 0x4, offset = 0x4, fixed_abs, tag = 'smem constant byte address 0x4 - core index']
  #allocation1 [shape = 'u32[144,128]{1,0:T(1,128)}', space=vmem, size = 0x12000, scoped, tag = 'internal scratch']
  #allocation2 [shape = 'f32[1,256]{1,0:T(1,128)}', space=vmem, size = 0x400, scoped, tag = 'scratch operand']
  %s0 = inlined_call_operand.hbm [shape: f32[2,64,256], index: 0, kind: input, shape index: {}]
  %s1 = inlined_call_operand.vmem [shape: f32[1,256], index: 1, kind: input, shape index: {}]
  %s2 = inlined_call_operand.vmem [shape: f32[1,256], index: 2, kind: input, shape index: {}]
  %s3 = inlined_call_operand.hbm [shape: f32[2,1,256], index: 3, kind: output, shape index: {}]
  %s4 = sld [smem:[#allocation0]]
  $region57: #{tpu_custom_call.1} parent=0
    _
  %s6 = ssub.s32 1, %s4
  %s7 = scalar_select 0, %s6, %s4
  $region1: #{tpu_custom_call.1} parent=0
    #allocation3 [shape = 'u8[131072]{0}', space=vmem, size = 0x20000, scoped, tag = 'input window, operand 0']
    #allocation4 [shape = 's32[2]{0}', space=sflag, size = 0x8, scoped, tag = 'scoped memory for tpu_custom_call.1']
    #allocation5 [shape = 's32[2]{0}', space=sflag, size = 0x8, scoped, tag = 'scoped memory for tpu_custom_call.1']
    #allocation6 [shape = 'u8[2048]{0}', space=vmem, size = 0x800, scoped, tag = 'output window, operand 0']
    %8 = vsyncpa [#allocation4], 0
    %s9 = scalar_lea.sflag [#allocation4], 1
    %10 = vsyncpa %s9, 0
    %11 = vsyncpa [#allocation5], 0
    %s12 = scalar_lea.sflag [#allocation5], 1
    %13 = vsyncpa %s12, 0
    loop: start=0, step=1, limit=4
    $region2: #{tpu_custom_call.1} parent=1 // loop_pre_header
      _
    $region3: #{tpu_custom_call.1} parent=1 // loop_header
      %s15 = sphi 0, %s19
      %p16 = scmp.ge.s32.totalorder %s15, 4
      %s22 = sphi 0, %s34
      %s23 = sphi 0, %s30
      %s24 = sphi 0, %s22
      %s25 = sphi 0, %s23
      %s26 = sphi 0, %s24
      %s27 = sphi 0, %s25
      %s39 = sphi 0, %s41
      %s42 = sphi 0, %s39
      %s43 = sphi 0, %s42
      %s59 = sphi 0, %s43
      %s63 = sphi 0, %s63
      %s65 = sphi 0, %s63
      %s66 = sphi 0, %s65
      %s80 = sphi 0, %s66
      %s84 = sphi 0, %s84
      %s86 = sphi 0, %s84
      %s87 = sphi 0, %s86
      %s101 = sphi 0, %s87
      %s107 = sphi 0, %s109
      %s110 = sphi 0, %s107
      %s111 = sphi 0, %s110
      %s127 = sphi 0, %s111
    $region4: #{tpu_custom_call.1} parent=1 // loop_header_branch
      %18 = sbr.rel (%p16) target = $region8
    $region5: #{tpu_custom_call.1} parent=1 // loop_body
      %s20 = ssub.s32 %s15, 1
      %s21 = ssub.s32 %s15, 2
      %s28 = sadd.s32 1, %s23
      %p29 = scmp.ge.s32.totalorder %s28, 1
      %s30 = scalar_select %p29, 0, %s28
      %s31 = sadd.s32 1, %s22
      %s32 = scalar_select %p29, %s31, %s22
      %p33 = scmp.ge.s32.totalorder %s32, 2
      %s34 = scalar_select %p33, 0, %s32
      %s35 = ssub.s32 %s22, %s34
      %s36 = ssub.s32 %s23, %s30
      %s37 = sor.u32 %s35, %s36
      %p38 = scmp.eq.s32.totalorder %s37, 0
      %s40 = sadd.s32 %s39, 1
      %s41 = scalar_select %p38, %s39, %s40
      %p44 = pneg %p38
      %p45 = scmp.eq.s32.totalorder %s15, 1
      %p46 = por %p44, %p45
      %p47 = scmp.ne.s32.totalorder %s39, %s42
      %p48 = scmp.eq.s32.totalorder %s15, 0
      %p49 = por %p47, %p48
      %p50 = scmp.ne.s32.totalorder %s39, %s42
      %p51 = scmp.eq.s32.totalorder %s20, 1
      %p52 = por %p50, %p51
      %p53 = scmp.ne.s32.totalorder %s42, %s43
      %p54 = scmp.eq.s32.totalorder %s20, 0
      %p55 = por %p53, %p54
      %p56 = scmp.ne.s32.totalorder %s42, %s43
      %p57 = scmp.eq.s32.totalorder %s21, 1
      %p58 = por %p56, %p57
      %p60 = scmp.ne.s32.totalorder %s43, %s59
      %p61 = scmp.eq.s32.totalorder %s21, 0
      %p62 = por %p60, %p61
      %s64 = sadd.s32 %s63, 1
      %p67 = scmp.eq.s32.totalorder %s15, 1
      %p68 = scmp.ne.s32.totalorder %s63, %s65
      %p69 = scmp.eq.s32.totalorder %s15, 0
      %p70 = por %p68, %p69
      %p71 = scmp.ne.s32.totalorder %s63, %s65
      %p72 = scmp.eq.s32.totalorder %s20, 1
      %p73 = por %p71, %p72
      %p74 = scmp.ne.s32.totalorder %s65, %s66
      %p75 = scmp.eq.s32.totalorder %s20, 0
      %p76 = por %p74, %p75
      %p77 = scmp.ne.s32.totalorder %s65, %s66
      %p78 = scmp.eq.s32.totalorder %s21, 1
      %p79 = por %p77, %p78
      %p81 = scmp.ne.s32.totalorder %s66, %s80
      %p82 = scmp.eq.s32.totalorder %s21, 0
      %p83 = por %p81, %p82
      %s85 = sadd.s32 %s84, 1
      %p88 = scmp.eq.s32.totalorder %s15, 1
      %p89 = scmp.ne.s32.totalorder %s84, %s86
      %p90 = scmp.eq.s32.totalorder %s15, 0
      %p91 = por %p89, %p90
      %p92 = scmp.ne.s32.totalorder %s84, %s86
      %p93 = scmp.eq.s32.totalorder %s20, 1
      %p94 = por %p92, %p93
      %p95 = scmp.ne.s32.totalorder %s86, %s87
      %p96 = scmp.eq.s32.totalorder %s20, 0
      %p97 = por %p95, %p96
      %p98 = scmp.ne.s32.totalorder %s86, %s87
      %p99 = scmp.eq.s32.totalorder %s21, 1
      %p100 = por %p98, %p99
      %p102 = scmp.ne.s32.totalorder %s87, %s101
      %p103 = scmp.eq.s32.totalorder %s21, 0
      %p104 = por %p102, %p103
      %s105 = ssub.s32 %s22, %s34
      %p106 = scmp.eq.s32.totalorder %s105, 0
      %s108 = sadd.s32 %s107, 1
      %s109 = scalar_select %p106, %s107, %s108
      %p112 = pneg %p106
      %p113 = scmp.eq.s32.totalorder %s15, 1
      %p114 = por %p112, %p113
      %p115 = scmp.ne.s32.totalorder %s107, %s110
      %p116 = scmp.eq.s32.totalorder %s15, 0
      %p117 = por %p115, %p116
      %p118 = scmp.ne.s32.totalorder %s107, %s110
      %p119 = scmp.eq.s32.totalorder %s20, 1
      %p120 = por %p118, %p119
      %p121 = scmp.ne.s32.totalorder %s110, %s111
      %p122 = scmp.eq.s32.totalorder %s20, 0
      %p123 = por %p121, %p122
      %p124 = scmp.ne.s32.totalorder %s110, %s111
      %p125 = scmp.eq.s32.totalorder %s21, 1
      %p126 = por %p124, %p125
      %p128 = scmp.ne.s32.totalorder %s111, %s127
      %p129 = scmp.eq.s32.totalorder %s21, 0
      %p130 = por %p128, %p129
      %p131 = scmp.le.s32.totalorder 1, %s15
      %p132 = scmp.lt.s32.totalorder %s15, 3
      %p133 = pnand %p131, %p132
      %p134 = pneg %p133
      // Predicated region
      $region9: #{tpu_custom_call.1} parent=5 // pred_check
        _
      $region10: #{tpu_custom_call.1} parent=5 // pred_check_branch
        %136 = sbr.rel (%p133) target = $region12
      $region11: #{tpu_custom_call.1} parent=5 // pred_region
        %s137 = ssub.s32 %s15, 1
        // Predicated region
        $region13: #{tpu_custom_call.1} parent=11 // pred_check
          %p138 = pneg %p76
        $region14: #{tpu_custom_call.1} parent=11 // pred_check_branch
          %140 = sbr.rel (%p138) target = $region16
        $region15: #{tpu_custom_call.1} parent=11 // pred_region
          _
        $region16: #{tpu_custom_call.1} parent=11 // pred_fallthru
          _
        // Predicated region
        $region17: #{tpu_custom_call.1} parent=11 // pred_check
          %p141 = pneg %p97
        $region18: #{tpu_custom_call.1} parent=11 // pred_check_branch
          %143 = sbr.rel (%p141) target = $region20
        $region19: #{tpu_custom_call.1} parent=11 // pred_region
          _
        $region20: #{tpu_custom_call.1} parent=11 // pred_fallthru
          _
      $region12: #{tpu_custom_call.1} parent=5 // pred_fallthru
        _
      %p144 = scmp.lt.s32.totalorder %s15, 2
      // Predicated region
      $region21: #{tpu_custom_call.1} parent=5 // pred_check
        %p145 = pneg %p144
      $region22: #{tpu_custom_call.1} parent=5 // pred_check_branch
        %147 = sbr.rel (%p145) target = $region24
      $region23: #{tpu_custom_call.1} parent=5 // pred_region
        // Predicated region
        $region25: #{tpu_custom_call.1} parent=23 // pred_check
          %p148 = pneg %p49
        $region26: #{tpu_custom_call.1} parent=23 // pred_check_branch
          %150 = sbr.rel (%p148) target = $region28
        $region27: #{tpu_custom_call.1} parent=23 // pred_region
          %s151 = sand.u32 %s39, 1
          %s152 = scalar_lea.sflag [#allocation4], %s151
          %s153 = sand.u32 %s39, 1
          %s154 = smul.addr %s153, 128
          %s155 = scalar_lea.vmem [#allocation3], %s154
          %s156 = smul.u32 8, %s23
          %s158 = ssub.s32 2048, 2048
          %159 = vsyncadd %s152, %s158
          %s160 = smul.addr %s156, 2
          %s161 = smul.addr %s22, 16
          %s162 = sadd.s32 %s160, %s161
          %s163 = smul.addr %s162, 128
          %s164 = scalar_lea.hbm %s0, %s163
          %s165 = sshll.u32 %s155, 4
          %s166 = int_to_ptr.vmem [resolvable:$true] %s165
          %171 = dma.hbm_to_vmem [thread:$0]  %s164, 2048, %s166, %s152, 256, 256, 16
        $region28: #{tpu_custom_call.1} parent=23 // pred_fallthru
          _
      $region24: #{tpu_custom_call.1} parent=5 // pred_fallthru
        _
      %p172 = scmp.le.s32.totalorder 1, %s15
      %p173 = scmp.lt.s32.totalorder %s15, 3
      %p174 = pnand %p172, %p173
      %p175 = pneg %p174
      // Predicated region
      $region29: #{tpu_custom_call.1} parent=5 // pred_check
        _
      $region30: #{tpu_custom_call.1} parent=5 // pred_check_branch
        %177 = sbr.rel (%p174) target = $region32
      $region31: #{tpu_custom_call.1} parent=5 // pred_region
        %s178 = ssub.s32 %s15, 1
        %s179 = sand.u32 %s42, 1
        %s180 = scalar_lea.sflag [#allocation4], %s179
        %s181 = sand.u32 %s42, 1
        %s182 = smul.addr %s181, 128
        %s183 = scalar_lea.vmem [#allocation3], %s182
        // Predicated region
        $region33: #{tpu_custom_call.1} parent=31 // pred_check
          %p184 = pneg %p55
        $region34: #{tpu_custom_call.1} parent=31 // pred_check_branch
          %186 = sbr.rel (%p184) target = $region36
        $region35: #{tpu_custom_call.1} parent=31 // pred_region
          %187 = dma.done %s180, 2048
        $region36: #{tpu_custom_call.1} parent=31 // pred_fallthru
          _
        %s188 = sand.u32 %s42, 1
        %s189 = scalar_lea.sflag [#allocation4], %s188
        %s190 = sand.u32 %s42, 1
        %s191 = smul.addr %s190, 128
        %s192 = scalar_lea.vmem [#allocation3], %s191
        %p193 = pneg %p55
        %p194 = pneg %p52
        %p195 = pneg %p76
        %p196 = pneg %p73
        %p197 = pneg %p97
        %p198 = pneg %p94
        %p199 = pneg %p123
        %p200 = pneg %p120
        %s201 = sand.u32 %s110, 1
        %s202 = scalar_lea.sflag [#allocation5], %s201
        %s203 = sand.u32 %s110, 1
        %s204 = smul.addr %s203, 2
        %s205 = scalar_lea.vmem [#allocation6], %s204
        %s206 = smul.u32 8, %s25
        %p207 = scmp.eq.s32.totalorder %s25, 0
        // Predicated region
        $region37: #{tpu_custom_call.1} parent=31 // pred_check
          %p208 = pneg %p207
        $region38: #{tpu_custom_call.1} parent=31 // pred_check_branch
          %210 = sbr.rel (%p208) target = $region40
        $region39: #{tpu_custom_call.1} parent=31 // pred_region
          %v211 = vlaneseq
          %vm212 = vcmp.ge.s32.totalorder %v211, 0
          %vm213 = vcmp.lt.s32.totalorder %v211, 256
          %vm214 = vmand %vm212, %vm213
          %215 = vst.msk [vmem:[#allocation2] sm:$0x3] %vm214, 0.0
        $region40: #{tpu_custom_call.1} parent=31 // pred_fallthru
          _
        %v216 = vld [vmem:[%s183] sm:$0xff]
        %v217 = vld [vmem:[%s183 + $0x8] sm:$0xff]
        %v218 = vld [vmem:[%s183 + $0x10] sm:$0xff]
        %v219 = vld [vmem:[%s183 + $0x18] sm:$0xff]
        %v220 = vld [vmem:[%s183 + $0x20] sm:$0xff]
        %v221 = vld [vmem:[%s183 + $0x28] sm:$0xff]
        %v222 = vld [vmem:[%s183 + $0x30] sm:$0xff]
        %v223 = vld [vmem:[%s183 + $0x38] sm:$0xff]
        %v224 = vld [vmem:[%s183 + $0x40] sm:$0xff]
        %v225 = vld [vmem:[%s183 + $0x48] sm:$0xff]
        %v226 = vld [vmem:[%s183 + $0x50] sm:$0xff]
        %v227 = vld [vmem:[%s183 + $0x58] sm:$0xff]
        %v228 = vld [vmem:[%s183 + $0x60] sm:$0xff]
        %v229 = vld [vmem:[%s183 + $0x68] sm:$0xff]
        %v230 = vld [vmem:[%s183 + $0x70] sm:$0xff]
        %v231 = vld [vmem:[%s183 + $0x78] sm:$0xff]
        %v232 = vld [vmem:[#allocation2] sm:$0x3]
        %v233 = vadd.f32 %v216, %v218
        %v234 = vadd.f32 %v233, %v220
        %v235 = vadd.f32 %v234, %v222
        %v236 = vadd.f32 %v235, %v224
        %v237 = vadd.f32 %v236, %v226
        %v238 = vadd.f32 %v237, %v228
        %v239 = vadd.f32 %v238, %v230
        %v240 = vrot.slane %v239, 4
        %v241 = vadd.f32 %v239, %v240
        %v242 = vrot.slane %v241, 2
        %v243 = vadd.f32 %v241, %v242
        %v244 = vrot.slane %v243, 1
        %v245 = vadd.f32 %v243, %v244
        %v246 = vadd.f32 %v217, %v219
        %v247 = vadd.f32 %v246, %v221
        %v248 = vadd.f32 %v247, %v223
        %v249 = vadd.f32 %v248, %v225
        %v250 = vadd.f32 %v249, %v227
        %v251 = vadd.f32 %v250, %v229
        %v252 = vadd.f32 %v251, %v231
        %v253 = vrot.slane %v252, 4
        %v254 = vadd.f32 %v252, %v253
        %v255 = vrot.slane %v254, 2
        %v256 = vadd.f32 %v254, %v255
        %v257 = vrot.slane %v256, 1
        %v258 = vadd.f32 %v256, %v257
        %v261 = vcombine.low %v245, %v258
        %v263 = vunpack.c.l.s4 1966171168
        %v264 = vunpack.c.0.s8 %v263
        %v265 = vlaneseq
        %v266 = vshrl.u32 %v265, 7
        %v267 = vsub.s32 %v264, %v266
        %v268 = vrot.slane %v261, %v267
        %v270 = vunpack.c.l.s4 1966171168
        %v271 = vunpack.c.0.s8 %v270
        %v272 = vlaneseq
        %v273 = vshrl.u32 %v272, 7
        %v274 = vsub.s32 %v271, %v273
        %v275 = vrot.slane %v268, %v274
        %v277 = vadd.f32 %v232, %v275
        %v278 = vlaneseq
        %vm279 = vcmp.ge.s32.totalorder %v278, 0
        %vm280 = vcmp.lt.s32.totalorder %v278, 256
        %vm281 = vmand %vm279, %vm280
        %282 = vst.msk [vmem:[#allocation2] sm:$0x3] %vm281, %v277
        // Predicated region
        $region41: #{tpu_custom_call.1} parent=31 // pred_check
          %p283 = pneg %p207
        $region42: #{tpu_custom_call.1} parent=31 // pred_check_branch
          %285 = sbr.rel (%p283) target = $region44
        $region43: #{tpu_custom_call.1} parent=31 // pred_region
          %v286 = vld [vmem:[#allocation2] sm:$0x3]
          %v287 = vmul.f32 %v286, 0.015625
          %v288 = vld [vmem:[%s1] sm:$0x3]
          %v289 = vmul.f32 %v287, %v288
          %v290 = vld [vmem:[%s2] sm:$0x3]
          %v291 = vadd.f32 %v289, %v290
          %292 = vst.msk [vmem:[%s205] sm:$0x3] %vm281, %v291
        $region44: #{tpu_custom_call.1} parent=31 // pred_fallthru
          _
        %s293 = sand.u32 %s110, 1
        %s294 = scalar_lea.sflag [#allocation5], %s293
        %s295 = sand.u32 %s110, 1
        %s296 = smul.addr %s295, 2
        %s297 = scalar_lea.vmem [#allocation6], %s296
        // Predicated region
        $region45: #{tpu_custom_call.1} parent=31 // pred_check
          %p298 = pneg %p120
        $region46: #{tpu_custom_call.1} parent=31 // pred_check_branch
          %300 = sbr.rel (%p298) target = $region48
        $region47: #{tpu_custom_call.1} parent=31 // pred_region
          %s302 = ssub.s32 32, 32
          %303 = vsyncadd %s294, %s302
          %s304 = smul.addr %s24, 2
          %s305 = smul.addr %s304, 16
          %s306 = scalar_lea.hbm %s3, %s305
          %s308 = sshll.u32 %s297, 4
          %s309 = int_to_ptr.vmem [resolvable:$true] %s308
          %311 = dma.vmem_to_hbm [thread:$0]  %s309, 32, %s306, %s294
        $region48: #{tpu_custom_call.1} parent=31 // pred_fallthru
          _
      $region32: #{tpu_custom_call.1} parent=5 // pred_fallthru
        _
      %p312 = scmp.le.s32.totalorder 2, %s15
      // Predicated region
      $region49: #{tpu_custom_call.1} parent=5 // pred_check
        %p313 = pneg %p312
      $region50: #{tpu_custom_call.1} parent=5 // pred_check_branch
        %315 = sbr.rel (%p313) target = $region52
      $region51: #{tpu_custom_call.1} parent=5 // pred_region
        %s316 = ssub.s32 %s15, 2
        // Predicated region
        $region53: #{tpu_custom_call.1} parent=51 // pred_check
          %p317 = pneg %p126
        $region54: #{tpu_custom_call.1} parent=51 // pred_check_branch
          %319 = sbr.rel (%p317) target = $region56
        $region55: #{tpu_custom_call.1} parent=51 // pred_region
          %s320 = sand.u32 %s111, 1
          %s321 = scalar_lea.sflag [#allocation5], %s320
          %s322 = sand.u32 %s111, 1
          %s323 = smul.addr %s322, 2
          %s324 = scalar_lea.vmem [#allocation6], %s323
          %325 = dma.done %s321, 32
        $region56: #{tpu_custom_call.1} parent=51 // pred_fallthru
          _
      $region52: #{tpu_custom_call.1} parent=5 // pred_fallthru
        _
    $region6: #{tpu_custom_call.1} parent=1 // loop_footer
      %s19 = sadd.s32 1, %s15
    $region7: #{tpu_custom_call.1} parent=1 // loop_footer_branch
      %14 = sbr.rel target = $region3
    $region8: #{tpu_custom_call.1} parent=1 // loop_exit
      _
    %326 = vsyncpa [#allocation4], 1
    %s327 = scalar_lea.sflag [#allocation4], 1
    %328 = vsyncpa %s327, 1
    %329 = vsyncpa [#allocation5], 1
    %s330 = scalar_lea.sflag [#allocation5], 1
    %331 = vsyncpa %s330, 1

</llo_original>
